<compile_context>
chip_gen: v5e
topology: v5e:2x2
jax: 0.10.0
libtpu: 0.0.40
codegen_flags: <defaults>
</compile_context>

<pallas_src>
import jax
import jax.numpy as jnp
from jax.experimental import pallas as pl
from jax.experimental.pallas import tpu as pltpu

_LANE = 128


def _round_up(v, m):
    return ((v + m - 1) // m) * m


def _make_fused_gnn_kernel(num_layers, tb):
    """Builds the fused kernel for a static layer count / batch tile size."""

    def kernel(adj_ref, x_ref, *refs):
        # refs = (w_0, b_0, w_1, b_1, ..., w_{L-1}, b_{L-1}, o_ref)
        o_ref = refs[-1]
        adj = adj_ref[...]                      # (Np, Np) bf16, resident across layers
        h = x_ref[...]                          # (TB, Np, D0) bf16 activation
        for l in range(num_layers):             # static unroll over layers
            w = refs[2 * l][...]                # (Din_l, Dout_l) bf16
            bias = refs[2 * l + 1][...]         # (1, Dout_l) f32
            # Node aggregation adj @ h_b per batch row (bf16 MXU, f32 accum),
            # gathered into one tall operand so the Linear matmul has a large M.
            agg = jnp.concatenate(
                [jnp.dot(adj, h[t], preferred_element_type=jnp.float32)
                     .astype(jnp.bfloat16)
                 for t in range(tb)],
                axis=0)                          # (TB*Np, Din_l) bf16
            # Linear + bias + ReLU in f32; dropout is identity at inference.
            y = jnp.maximum(
                jnp.dot(agg, w, preferred_element_type=jnp.float32) + bias, 0.0)
            if l + 1 < num_layers:
                # Keep inter-layer activation bf16 (next dot consumes bf16 anyway).
                h = y.astype(jnp.bfloat16).reshape(tb, h.shape[1], w.shape[1])
            else:
                o_ref[...] = y.astype(o_ref.dtype).reshape(o_ref.shape)
        # TODO(synk): training-mode dropout mask not implemented (inference only).

    return kernel


@jax.jit
def multilayer_gnn_forward(x, adj, params):
    """x: (B, N, in_dim) f32, adj: (N, N) f32, params: list of (W(in,out), b(out))."""
    B, N, in_dim = x.shape
    L = len(params)
    out_dim = params[-1][0].shape[1]

    # --- per-layer padding (each layer padded to its own 128-multiple) ---
    Np = _round_up(N, _LANE)            # node dim: MXU contraction width + packing
    d_in0 = _round_up(in_dim, _LANE)
    w_pads, b_pads = [], []
    for (w, b) in params:
        din, dout = w.shape
        dinp, doutp = _round_up(din, _LANE), _round_up(dout, _LANE)
        wp = jnp.zeros((dinp, doutp), jnp.bfloat16).at[:din, :dout].set(
            w.astype(jnp.bfloat16))
        bp = jnp.zeros((1, doutp), jnp.float32).at[0, :dout].set(
            b.astype(jnp.float32))
        w_pads.append(wp)
        b_pads.append(bp)
    d_last = w_pads[-1].shape[1]
    d_max = max([d_in0] + [wp.shape[1] for wp in w_pads])

    adj_p = jnp.zeros((Np, Np), jnp.bfloat16).at[:N, :N].set(adj.astype(jnp.bfloat16))

    # --- batch tiling: amortize per-step overhead, keep >=2 steps for megacore ---
    TB = max(1, min(8, pl.cdiv(B, 2)))

    def vmem_need(tb):
        act = tb * Np * d_max
        return (Np * Np * 2                                   # adj, single-buffered
                + sum(wp.size for wp in w_pads) * 2           # weights, single-buffered
                + sum(bp.size for bp in b_pads) * 4           # biases, single-buffered
                + 2 * tb * Np * d_in0 * 2                     # x block, double-buffered bf16
                + 2 * tb * Np * d_last * 4                    # out block, double-buffered f32
                + act * 10)                                    # live f32 agg/y + bf16 h values

    try:
        vmem_cap = pltpu.get_tpu_info().vmem_capacity_bytes   # 128 MiB v5e/v6e, 64 MiB v7x
    except Exception:
        vmem_cap = 64 * 1024 * 1024
    budget = int(0.85 * vmem_cap)
    while vmem_need(TB) > budget and TB > 1:
        TB //= 2
    need = vmem_need(TB)
    if need > budget:
        # TODO(synk): adj row-strip / per-layer weight streaming fallback not implemented.
        raise NotImplementedError(
            f"fused GNN kernel needs ~{need} B of VMEM (> {budget} B budget); "
            "streaming path not implemented")
    vmem_limit = int(min(budget, max(32 * 1024 * 1024, 2 * need)))

    Bp = _round_up(B, TB)
    x_p = jnp.zeros((Bp, Np, d_in0), jnp.bfloat16).at[:B, :N, :in_dim].set(
        x.astype(jnp.bfloat16))

    invariant = dict(pipeline_mode=pl.Buffered(1))   # constant index_map => single buffer
    in_specs = [
        pl.BlockSpec((Np, Np), lambda i: (0, 0), **invariant),     # adj (grid-invariant)
        pl.BlockSpec((TB, Np, d_in0), lambda i: (i, 0, 0)),        # x batch tile
    ]
    operands = [adj_p, x_p]
    for wp, bp in zip(w_pads, b_pads):
        in_specs.append(pl.BlockSpec(wp.shape, lambda i: (0, 0), **invariant))
        in_specs.append(pl.BlockSpec(bp.shape, lambda i: (0, 0), **invariant))
        operands.extend([wp, bp])

    out_pad = pl.pallas_call(
        _make_fused_gnn_kernel(L, TB),
        out_shape=jax.ShapeDtypeStruct((Bp, Np, d_last), jnp.float32),
        grid_spec=pltpu.PrefetchScalarGridSpec(
            num_scalar_prefetch=0,
            grid=(Bp // TB,),
            in_specs=in_specs,
            out_specs=pl.BlockSpec((TB, Np, d_last), lambda i: (i, 0, 0)),
        ),
        compiler_params=pltpu.CompilerParams(
            dimension_semantics=("parallel",),     # shard batch tiles across TCs (v7x)
            vmem_limit_bytes=vmem_limit,
        ),
    )(*operands)

    return out_pad[:B, :N, :out_dim]


def init_multilayer_gnn_params(key, layer_num, in_dim, hid_dim, out_dim):
    """Deterministic init mimicking nn.Linear default (U(-1/sqrt(fan_in), +...))."""
    dims = [in_dim] + [hid_dim] * (layer_num - 1) + [out_dim]
    params = []
    for i in range(layer_num):
        fan_in, fan_out = dims[i], dims[i + 1]
        k_w, k_b, key = jax.random.split(key, 3)
        bound = 1.0 / (fan_in ** 0.5)
        # W stored as (in, out) so the kernel computes h @ W.
        w = jax.random.uniform(k_w, (fan_in, fan_out), jnp.float32, -bound, bound)
        b = jax.random.uniform(k_b, (fan_out,), jnp.float32, -bound, bound)
        params.append((w, b))
    return params


def _reference_forward(x, adj, params):
    # Pure-JAX f32 reference: x = relu((adj @ x) @ W + b) per layer.
    hi = jax.lax.Precision.HIGHEST
    for w, b in params:
        x = jnp.einsum("nm,bmc->bnc", adj, x, precision=hi)
        x = jnp.maximum(jnp.matmul(x, w, precision=hi) + b, 0.0)
    return x


if __name__ == "__main__":
    # Small shapes consistent with the module's forward (x is B*N*C).
    B, N = 2, 8
    in_dim, hid_dim, out_dim = 16, 32, 8
    layer_num = 3

    key = jax.random.PRNGKey(0)
    kx, kadj, kparams = jax.random.split(key, 3)

    x = jax.random.normal(kx, (B, N, in_dim), jnp.float32)
    adj = jax.random.uniform(kadj, (N, N), jnp.float32)
    params = init_multilayer_gnn_params(kparams, layer_num, in_dim, hid_dim, out_dim)

    out = jax.block_until_ready(multilayer_gnn_forward(x, adj, params))

    ref = _reference_forward(x, adj, params)
    assert out.shape == (B, N, out_dim), out.shape
    # bf16 MXU inputs with f32 accumulation -> loosened tolerance vs f32 reference.
    max_err = float(jnp.max(jnp.abs(out - ref)))
    assert jnp.allclose(out, ref, atol=5e-2, rtol=5e-2), f"mismatch, max|diff|={max_err}"

    print("KERNEL_OK")
</pallas_src>

<mosaic_0001>
module attributes {stable_mosaic.version = 11 : i64} {
  func.func @kernel(%arg0: i32, %arg1: memref<128x128xbf16, #tpu.memory_space<vmem>>, %arg2: memref<1x128x128xbf16, #tpu.memory_space<vmem>>, %arg3: memref<128x128xbf16, #tpu.memory_space<vmem>>, %arg4: memref<1x128xf32, #tpu.memory_space<vmem>>, %arg5: memref<128x128xbf16, #tpu.memory_space<vmem>>, %arg6: memref<1x128xf32, #tpu.memory_space<vmem>>, %arg7: memref<128x128xbf16, #tpu.memory_space<vmem>>, %arg8: memref<1x128xf32, #tpu.memory_space<vmem>>, %arg9: memref<1x128x128xf32, #tpu.memory_space<vmem>>) attributes {dimension_semantics = [#tpu.dimension_semantics<parallel>], iteration_bounds = array<i64: 2>, scalar_prefetch = 0 : i64, scratch_operands = 0 : i64, tpu.core_type = #tpu.core_type<tc>, window_params = [{pipeline_mode = #tpu.pipeline_mode<synchronous>, transform_indices = @transform_0, window_bounds = array<i64: 128, 128>}, {transform_indices = @transform_1, window_bounds = array<i64: 1, 128, 128>}, {pipeline_mode = #tpu.pipeline_mode<synchronous>, transform_indices = @transform_2, window_bounds = array<i64: 128, 128>}, {pipeline_mode = #tpu.pipeline_mode<synchronous>, transform_indices = @transform_3, window_bounds = array<i64: 1, 128>}, {pipeline_mode = #tpu.pipeline_mode<synchronous>, transform_indices = @transform_4, window_bounds = array<i64: 128, 128>}, {pipeline_mode = #tpu.pipeline_mode<synchronous>, transform_indices = @transform_5, window_bounds = array<i64: 1, 128>}, {pipeline_mode = #tpu.pipeline_mode<synchronous>, transform_indices = @transform_6, window_bounds = array<i64: 128, 128>}, {pipeline_mode = #tpu.pipeline_mode<synchronous>, transform_indices = @transform_7, window_bounds = array<i64: 1, 128>}, {transform_indices = @transform_8, window_bounds = array<i64: 1, 128, 128>}]} {
    %c0 = arith.constant 0 : index
    %c0_0 = arith.constant 0 : index
    %0 = vector.load %arg1[%c0, %c0_0] : memref<128x128xbf16, #tpu.memory_space<vmem>>, vector<128x128xbf16>
    %c0_1 = arith.constant 0 : index
    %c0_2 = arith.constant 0 : index
    %c0_3 = arith.constant 0 : index
    %1 = vector.load %arg2[%c0_1, %c0_2, %c0_3] : memref<1x128x128xbf16, #tpu.memory_space<vmem>>, vector<1x128x128xbf16>
    %c0_4 = arith.constant 0 : index
    %c0_5 = arith.constant 0 : index
    %2 = vector.load %arg3[%c0_4, %c0_5] : memref<128x128xbf16, #tpu.memory_space<vmem>>, vector<128x128xbf16>
    %c0_6 = arith.constant 0 : index
    %c0_7 = arith.constant 0 : index
    %3 = vector.load %arg4[%c0_6, %c0_7] : memref<1x128xf32, #tpu.memory_space<vmem>>, vector<1x128xf32>
    %4 = vector.shape_cast %1 : vector<1x128x128xbf16> to vector<128x128xbf16>
    %cst = arith.constant dense<0.000000e+00> : vector<128x128xf32>
    %5 = tpu.matmul %0, %4, %cst {dimension_numbers = #tpu.dot_dimension_numbers<[1], [0], [0], [1], [0, 0, 1, 1], [], []>} : vector<128x128xbf16>, vector<128x128xbf16>, vector<128x128xf32> -> vector<128x128xf32>
    %6 = arith.truncf %5 : vector<128x128xf32> to vector<128x128xbf16>
    %cst_8 = arith.constant dense<0.000000e+00> : vector<128x128xf32>
    %7 = tpu.matmul %6, %2, %cst_8 {dimension_numbers = #tpu.dot_dimension_numbers<[1], [0], [0], [1], [0, 0, 1, 1], [], []>} : vector<128x128xbf16>, vector<128x128xbf16>, vector<128x128xf32> -> vector<128x128xf32>
    %8 = vector.broadcast %3 : vector<1x128xf32> to vector<128x128xf32>
    %9 = arith.addf %7, %8 : vector<128x128xf32>
    %cst_9 = arith.constant 0.000000e+00 : f32
    %10 = vector.broadcast %cst_9 : f32 to vector<128x128xf32>
    %11 = arith.maximumf %9, %10 : vector<128x128xf32>
    %12 = arith.truncf %11 : vector<128x128xf32> to vector<128x128xbf16>
    %13 = vector.shape_cast %12 : vector<128x128xbf16> to vector<1x128x128xbf16>
    %c0_10 = arith.constant 0 : index
    %c0_11 = arith.constant 0 : index
    %14 = vector.load %arg5[%c0_10, %c0_11] : memref<128x128xbf16, #tpu.memory_space<vmem>>, vector<128x128xbf16>
    %c0_12 = arith.constant 0 : index
    %c0_13 = arith.constant 0 : index
    %15 = vector.load %arg6[%c0_12, %c0_13] : memref<1x128xf32, #tpu.memory_space<vmem>>, vector<1x128xf32>
    %16 = vector.shape_cast %13 : vector<1x128x128xbf16> to vector<128x128xbf16>
    %cst_14 = arith.constant dense<0.000000e+00> : vector<128x128xf32>
    %17 = tpu.matmul %0, %16, %cst_14 {dimension_numbers = #tpu.dot_dimension_numbers<[1], [0], [0], [1], [0, 0, 1, 1], [], []>} : vector<128x128xbf16>, vector<128x128xbf16>, vector<128x128xf32> -> vector<128x128xf32>
    %18 = arith.truncf %17 : vector<128x128xf32> to vector<128x128xbf16>
    %cst_15 = arith.constant dense<0.000000e+00> : vector<128x128xf32>
    %19 = tpu.matmul %18, %14, %cst_15 {dimension_numbers = #tpu.dot_dimension_numbers<[1], [0], [0], [1], [0, 0, 1, 1], [], []>} : vector<128x128xbf16>, vector<128x128xbf16>, vector<128x128xf32> -> vector<128x128xf32>
    %20 = vector.broadcast %15 : vector<1x128xf32> to vector<128x128xf32>
    %21 = arith.addf %19, %20 : vector<128x128xf32>
    %cst_16 = arith.constant 0.000000e+00 : f32
    %22 = vector.broadcast %cst_16 : f32 to vector<128x128xf32>
    %23 = arith.maximumf %21, %22 : vector<128x128xf32>
    %24 = arith.truncf %23 : vector<128x128xf32> to vector<128x128xbf16>
    %25 = vector.shape_cast %24 : vector<128x128xbf16> to vector<1x128x128xbf16>
    %c0_17 = arith.constant 0 : index
    %c0_18 = arith.constant 0 : index
    %26 = vector.load %arg7[%c0_17, %c0_18] : memref<128x128xbf16, #tpu.memory_space<vmem>>, vector<128x128xbf16>
    %c0_19 = arith.constant 0 : index
    %c0_20 = arith.constant 0 : index
    %27 = vector.load %arg8[%c0_19, %c0_20] : memref<1x128xf32, #tpu.memory_space<vmem>>, vector<1x128xf32>
    %28 = vector.shape_cast %25 : vector<1x128x128xbf16> to vector<128x128xbf16>
    %cst_21 = arith.constant dense<0.000000e+00> : vector<128x128xf32>
    %29 = tpu.matmul %0, %28, %cst_21 {dimension_numbers = #tpu.dot_dimension_numbers<[1], [0], [0], [1], [0, 0, 1, 1], [], []>} : vector<128x128xbf16>, vector<128x128xbf16>, vector<128x128xf32> -> vector<128x128xf32>
    %30 = arith.truncf %29 : vector<128x128xf32> to vector<128x128xbf16>
    %cst_22 = arith.constant dense<0.000000e+00> : vector<128x128xf32>
    %31 = tpu.matmul %30, %26, %cst_22 {dimension_numbers = #tpu.dot_dimension_numbers<[1], [0], [0], [1], [0, 0, 1, 1], [], []>} : vector<128x128xbf16>, vector<128x128xbf16>, vector<128x128xf32> -> vector<128x128xf32>
    %32 = vector.broadcast %27 : vector<1x128xf32> to vector<128x128xf32>
    %33 = arith.addf %31, %32 : vector<128x128xf32>
    %cst_23 = arith.constant 0.000000e+00 : f32
    %34 = vector.broadcast %cst_23 : f32 to vector<128x128xf32>
    %35 = arith.maximumf %33, %34 : vector<128x128xf32>
    %36 = vector.shape_cast %35 : vector<128x128xf32> to vector<1x128x128xf32>
    %c0_24 = arith.constant 0 : index
    %c0_25 = arith.constant 0 : index
    %c0_26 = arith.constant 0 : index
    %37 = vector.load %arg9[%c0_24, %c0_25, %c0_26] : memref<1x128x128xf32, #tpu.memory_space<vmem>>, vector<1x128x128xf32>
    tpu.vector_store %arg9[%c0_24, %c0_25, %c0_26], %36 {strides = array<i32>} : memref<1x128x128xf32, #tpu.memory_space<vmem>>, vector<1x128x128xf32>,
    return
  }
  func.func @transform_0(%arg0: i32) -> (i32, i32) {
    %c0_i32 = arith.constant 0 : i32
    %c0_i32_0 = arith.constant 0 : i32
    %c0_i32_1 = arith.constant 0 : i32
    return %c0_i32, %c0_i32_0 : i32, i32
  }
  func.func @transform_1(%arg0: i32) -> (i32, i32, i32) {
    %c0_i32 = arith.constant 0 : i32
    %c0_i32_0 = arith.constant 0 : i32
    %c0_i32_1 = arith.constant 0 : i32
    return %arg0, %c0_i32, %c0_i32_0 : i32, i32, i32
  }
  func.func @transform_2(%arg0: i32) -> (i32, i32) {
    %c0_i32 = arith.constant 0 : i32
    %c0_i32_0 = arith.constant 0 : i32
    %c0_i32_1 = arith.constant 0 : i32
    return %c0_i32, %c0_i32_0 : i32, i32
  }
  func.func @transform_3(%arg0: i32) -> (i32, i32) {
    %c0_i32 = arith.constant 0 : i32
    %c0_i32_0 = arith.constant 0 : i32
    %c0_i32_1 = arith.constant 0 : i32
    return %c0_i32, %c0_i32_0 : i32, i32
  }
  func.func @transform_4(%arg0: i32) -> (i32, i32) {
    %c0_i32 = arith.constant 0 : i32
    %c0_i32_0 = arith.constant 0 : i32
    %c0_i32_1 = arith.constant 0 : i32
    return %c0_i32, %c0_i32_0 : i32, i32
  }
  func.func @transform_5(%arg0: i32) -> (i32, i32) {
    %c0_i32 = arith.constant 0 : i32
    %c0_i32_0 = arith.constant 0 : i32
    %c0_i32_1 = arith.constant 0 : i32
    return %c0_i32, %c0_i32_0 : i32, i32
  }
  func.func @transform_6(%arg0: i32) -> (i32, i32) {
    %c0_i32 = arith.constant 0 : i32
    %c0_i32_0 = arith.constant 0 : i32
    %c0_i32_1 = arith.constant 0 : i32
    return %c0_i32, %c0_i32_0 : i32, i32
  }
  func.func @transform_7(%arg0: i32) -> (i32, i32) {
    %c0_i32 = arith.constant 0 : i32
    %c0_i32_0 = arith.constant 0 : i32
    %c0_i32_1 = arith.constant 0 : i32
    return %c0_i32, %c0_i32_0 : i32, i32
  }
  func.func @transform_8(%arg0: i32) -> (i32, i32, i32) {
    %c0_i32 = arith.constant 0 : i32
    %c0_i32_0 = arith.constant 0 : i32
    %c0_i32_1 = arith.constant 0 : i32
    return %arg0, %c0_i32, %c0_i32_0 : i32, i32, i32
  }
}

</mosaic_0001>

<llo_original>
// kernel: multilayer_gnn_forward.1
$region0: #{multilayer_gnn_forward.1}
  #allocation0 [shape = 'u32[]', space=smem, size = 0x4, offset = 0x4, fixed_abs, tag = 'smem constant byte address 0x4 - core index']
  #allocation1 [shape = 'u32[72,128]{1,0:T(1,128)}', space=vmem, size = 0x9000, scoped, tag = 'internal scratch']
  %s0 = inlined_call_operand.vmem [shape: bf16[128,128], index: 0, kind: input, shape index: {}]
  %s1 = inlined_call_operand.vmem [shape: bf16[2,128,128], index: 1, kind: input, shape index: {}]
  %s2 = inlined_call_operand.vmem [shape: bf16[128,128], index: 2, kind: input, shape index: {}]
  %s3 = inlined_call_operand.vmem [shape: f32[1,128], index: 3, kind: input, shape index: {}]
  %s4 = inlined_call_operand.vmem [shape: bf16[128,128], index: 4, kind: input, shape index: {}]
  %s5 = inlined_call_operand.vmem [shape: f32[1,128], index: 5, kind: input, shape index: {}]
  %s6 = inlined_call_operand.vmem [shape: bf16[128,128], index: 6, kind: input, shape index: {}]
  %s7 = inlined_call_operand.vmem [shape: f32[1,128], index: 7, kind: input, shape index: {}]
  %s8 = inlined_call_operand.vmem [shape: f32[2,128,128], index: 8, kind: output, shape index: {}]
  %s9 = sld [smem:[#allocation0]]
  $region65: #{multilayer_gnn_forward.1} parent=0
    _
  %s11 = ssub.s32 1, %s9
  %s12 = scalar_select 0, %s11, %s9
  loop: start=0, step=1, limit=4
  $region2: #{multilayer_gnn_forward.1} parent=0 // loop_pre_header
    _
  $region3: #{multilayer_gnn_forward.1} parent=0 // loop_header
    %s14 = sphi 0, %s18
    %p15 = scmp.ge.s32.totalorder %s14, 4
    %s22 = sphi 0, %s22
    %s24 = sphi 0, %s22
    %s25 = sphi 0, %s24
    %s39 = sphi 0, %s25
    %s45 = sphi 0, %s47
    %s48 = sphi 0, %s45
    %s49 = sphi 0, %s48
    %s65 = sphi 0, %s49
    %s69 = sphi 0, %s69
    %s71 = sphi 0, %s69
    %s72 = sphi 0, %s71
    %s86 = sphi 0, %s72
    %s90 = sphi 0, %s90
    %s92 = sphi 0, %s90
    %s93 = sphi 0, %s92
    %s107 = sphi 0, %s93
    %s111 = sphi 0, %s111
    %s113 = sphi 0, %s111
    %s114 = sphi 0, %s113
    %s128 = sphi 0, %s114
    %s132 = sphi 0, %s132
    %s134 = sphi 0, %s132
    %s135 = sphi 0, %s134
    %s149 = sphi 0, %s135
    %s153 = sphi 0, %s153
    %s155 = sphi 0, %s153
    %s156 = sphi 0, %s155
    %s170 = sphi 0, %s156
    %s174 = sphi 0, %s174
    %s176 = sphi 0, %s174
    %s177 = sphi 0, %s176
    %s191 = sphi 0, %s177
    %s197 = sphi 0, %s199
    %s200 = sphi 0, %s197
    %s201 = sphi 0, %s200
    %s217 = sphi 0, %s201
  $region4: #{multilayer_gnn_forward.1} parent=0 // loop_header_branch
    %17 = sbr.rel (%p15) target = $region8
  $region5: #{multilayer_gnn_forward.1} parent=0 // loop_body
    %s19 = ssub.s32 %s14, 1
    %s20 = ssub.s32 %s14, 2
    %s21 = sadd.s32 %s14, 1
    %s23 = sadd.s32 %s22, 1
    %p26 = scmp.eq.s32.totalorder %s14, 1
    %p27 = scmp.ne.s32.totalorder %s22, %s24
    %p28 = scmp.eq.s32.totalorder %s14, 0
    %p29 = por %p27, %p28
    %p30 = scmp.ne.s32.totalorder %s22, %s24
    %p31 = scmp.eq.s32.totalorder %s19, 1
    %p32 = por %p30, %p31
    %p33 = scmp.ne.s32.totalorder %s24, %s25
    %p34 = scmp.eq.s32.totalorder %s19, 0
    %p35 = por %p33, %p34
    %p36 = scmp.ne.s32.totalorder %s24, %s25
    %p37 = scmp.eq.s32.totalorder %s20, 1
    %p38 = por %p36, %p37
    %p40 = scmp.ne.s32.totalorder %s25, %s39
    %p41 = scmp.eq.s32.totalorder %s20, 0
    %p42 = por %p40, %p41
    %s43 = ssub.s32 %s14, %s21
    %p44 = scmp.eq.s32.totalorder %s43, 0
    %s46 = sadd.s32 %s45, 1
    %s47 = scalar_select %p44, %s45, %s46
    %p50 = pneg %p44
    %p51 = scmp.eq.s32.totalorder %s14, 1
    %p52 = por %p50, %p51
    %p53 = scmp.ne.s32.totalorder %s45, %s48
    %p54 = scmp.eq.s32.totalorder %s14, 0
    %p55 = por %p53, %p54
    %p56 = scmp.ne.s32.totalorder %s45, %s48
    %p57 = scmp.eq.s32.totalorder %s19, 1
    %p58 = por %p56, %p57
    %p59 = scmp.ne.s32.totalorder %s48, %s49
    %p60 = scmp.eq.s32.totalorder %s19, 0
    %p61 = por %p59, %p60
    %p62 = scmp.ne.s32.totalorder %s48, %s49
    %p63 = scmp.eq.s32.totalorder %s20, 1
    %p64 = por %p62, %p63
    %p66 = scmp.ne.s32.totalorder %s49, %s65
    %p67 = scmp.eq.s32.totalorder %s20, 0
    %p68 = por %p66, %p67
    %s70 = sadd.s32 %s69, 1
    %p73 = scmp.eq.s32.totalorder %s14, 1
    %p74 = scmp.ne.s32.totalorder %s69, %s71
    %p75 = scmp.eq.s32.totalorder %s14, 0
    %p76 = por %p74, %p75
    %p77 = scmp.ne.s32.totalorder %s69, %s71
    %p78 = scmp.eq.s32.totalorder %s19, 1
    %p79 = por %p77, %p78
    %p80 = scmp.ne.s32.totalorder %s71, %s72
    %p81 = scmp.eq.s32.totalorder %s19, 0
    %p82 = por %p80, %p81
    %p83 = scmp.ne.s32.totalorder %s71, %s72
    %p84 = scmp.eq.s32.totalorder %s20, 1
    %p85 = por %p83, %p84
    %p87 = scmp.ne.s32.totalorder %s72, %s86
    %p88 = scmp.eq.s32.totalorder %s20, 0
    %p89 = por %p87, %p88
    %s91 = sadd.s32 %s90, 1
    %p94 = scmp.eq.s32.totalorder %s14, 1
    %p95 = scmp.ne.s32.totalorder %s90, %s92
    %p96 = scmp.eq.s32.totalorder %s14, 0
    %p97 = por %p95, %p96
    %p98 = scmp.ne.s32.totalorder %s90, %s92
    %p99 = scmp.eq.s32.totalorder %s19, 1
    %p100 = por %p98, %p99
    %p101 = scmp.ne.s32.totalorder %s92, %s93
    %p102 = scmp.eq.s32.totalorder %s19, 0
    %p103 = por %p101, %p102
    %p104 = scmp.ne.s32.totalorder %s92, %s93
    %p105 = scmp.eq.s32.totalorder %s20, 1
    %p106 = por %p104, %p105
    %p108 = scmp.ne.s32.totalorder %s93, %s107
    %p109 = scmp.eq.s32.totalorder %s20, 0
    %p110 = por %p108, %p109
    %s112 = sadd.s32 %s111, 1
    %p115 = scmp.eq.s32.totalorder %s14, 1
    %p116 = scmp.ne.s32.totalorder %s111, %s113
    %p117 = scmp.eq.s32.totalorder %s14, 0
    %p118 = por %p116, %p117
    %p119 = scmp.ne.s32.totalorder %s111, %s113
    %p120 = scmp.eq.s32.totalorder %s19, 1
    %p121 = por %p119, %p120
    %p122 = scmp.ne.s32.totalorder %s113, %s114
    %p123 = scmp.eq.s32.totalorder %s19, 0
    %p124 = por %p122, %p123
    %p125 = scmp.ne.s32.totalorder %s113, %s114
    %p126 = scmp.eq.s32.totalorder %s20, 1
    %p127 = por %p125, %p126
    %p129 = scmp.ne.s32.totalorder %s114, %s128
    %p130 = scmp.eq.s32.totalorder %s20, 0
    %p131 = por %p129, %p130
    %s133 = sadd.s32 %s132, 1
    %p136 = scmp.eq.s32.totalorder %s14, 1
    %p137 = scmp.ne.s32.totalorder %s132, %s134
    %p138 = scmp.eq.s32.totalorder %s14, 0
    %p139 = por %p137, %p138
    %p140 = scmp.ne.s32.totalorder %s132, %s134
    %p141 = scmp.eq.s32.totalorder %s19, 1
    %p142 = por %p140, %p141
    %p143 = scmp.ne.s32.totalorder %s134, %s135
    %p144 = scmp.eq.s32.totalorder %s19, 0
    %p145 = por %p143, %p144
    %p146 = scmp.ne.s32.totalorder %s134, %s135
    %p147 = scmp.eq.s32.totalorder %s20, 1
    %p148 = por %p146, %p147
    %p150 = scmp.ne.s32.totalorder %s135, %s149
    %p151 = scmp.eq.s32.totalorder %s20, 0
    %p152 = por %p150, %p151
    %s154 = sadd.s32 %s153, 1
    %p157 = scmp.eq.s32.totalorder %s14, 1
    %p158 = scmp.ne.s32.totalorder %s153, %s155
    %p159 = scmp.eq.s32.totalorder %s14, 0
    %p160 = por %p158, %p159
    %p161 = scmp.ne.s32.totalorder %s153, %s155
    %p162 = scmp.eq.s32.totalorder %s19, 1
    %p163 = por %p161, %p162
    %p164 = scmp.ne.s32.totalorder %s155, %s156
    %p165 = scmp.eq.s32.totalorder %s19, 0
    %p166 = por %p164, %p165
    %p167 = scmp.ne.s32.totalorder %s155, %s156
    %p168 = scmp.eq.s32.totalorder %s20, 1
    %p169 = por %p167, %p168
    %p171 = scmp.ne.s32.totalorder %s156, %s170
    %p172 = scmp.eq.s32.totalorder %s20, 0
    %p173 = por %p171, %p172
    %s175 = sadd.s32 %s174, 1
    %p178 = scmp.eq.s32.totalorder %s14, 1
    %p179 = scmp.ne.s32.totalorder %s174, %s176
    %p180 = scmp.eq.s32.totalorder %s14, 0
    %p181 = por %p179, %p180
    %p182 = scmp.ne.s32.totalorder %s174, %s176
    %p183 = scmp.eq.s32.totalorder %s19, 1
    %p184 = por %p182, %p183
    %p185 = scmp.ne.s32.totalorder %s176, %s177
    %p186 = scmp.eq.s32.totalorder %s19, 0
    %p187 = por %p185, %p186
    %p188 = scmp.ne.s32.totalorder %s176, %s177
    %p189 = scmp.eq.s32.totalorder %s20, 1
    %p190 = por %p188, %p189
    %p192 = scmp.ne.s32.totalorder %s177, %s191
    %p193 = scmp.eq.s32.totalorder %s20, 0
    %p194 = por %p192, %p193
    %s195 = ssub.s32 %s14, %s21
    %p196 = scmp.eq.s32.totalorder %s195, 0
    %s198 = sadd.s32 %s197, 1
    %s199 = scalar_select %p196, %s197, %s198
    %p202 = pneg %p196
    %p203 = scmp.eq.s32.totalorder %s14, 1
    %p204 = por %p202, %p203
    %p205 = scmp.ne.s32.totalorder %s197, %s200
    %p206 = scmp.eq.s32.totalorder %s14, 0
    %p207 = por %p205, %p206
    %p208 = scmp.ne.s32.totalorder %s197, %s200
    %p209 = scmp.eq.s32.totalorder %s19, 1
    %p210 = por %p208, %p209
    %p211 = scmp.ne.s32.totalorder %s200, %s201
    %p212 = scmp.eq.s32.totalorder %s19, 0
    %p213 = por %p211, %p212
    %p214 = scmp.ne.s32.totalorder %s200, %s201
    %p215 = scmp.eq.s32.totalorder %s20, 1
    %p216 = por %p214, %p215
    %p218 = scmp.ne.s32.totalorder %s201, %s217
    %p219 = scmp.eq.s32.totalorder %s20, 0
    %p220 = por %p218, %p219
    %p221 = scmp.le.s32.totalorder 1, %s14
    %p222 = scmp.lt.s32.totalorder %s14, 3
    %p223 = pnand %p221, %p222
    %p224 = pneg %p223
    // Predicated region
    $region9: #{multilayer_gnn_forward.1} parent=5 // pred_check
      _
    $region10: #{multilayer_gnn_forward.1} parent=5 // pred_check_branch
      %226 = sbr.rel (%p223) target = $region12
    $region11: #{multilayer_gnn_forward.1} parent=5 // pred_region
      %s227 = ssub.s32 %s14, 1
      // Predicated region
      $region13: #{multilayer_gnn_forward.1} parent=11 // pred_check
        %p228 = pneg %p35
      $region14: #{multilayer_gnn_forward.1} parent=11 // pred_check_branch
        %230 = sbr.rel (%p228) target = $region16
      $region15: #{multilayer_gnn_forward.1} parent=11 // pred_region
        _
      $region16: #{multilayer_gnn_forward.1} parent=11 // pred_fallthru
        _
      // Predicated region
      $region17: #{multilayer_gnn_forward.1} parent=11 // pred_check
        %p231 = pneg %p82
      $region18: #{multilayer_gnn_forward.1} parent=11 // pred_check_branch
        %233 = sbr.rel (%p231) target = $region20
      $region19: #{multilayer_gnn_forward.1} parent=11 // pred_region
        _
      $region20: #{multilayer_gnn_forward.1} parent=11 // pred_fallthru
        _
      // Predicated region
      $region21: #{multilayer_gnn_forward.1} parent=11 // pred_check
        %p234 = pneg %p103
      $region22: #{multilayer_gnn_forward.1} parent=11 // pred_check_branch
        %236 = sbr.rel (%p234) target = $region24
      $region23: #{multilayer_gnn_forward.1} parent=11 // pred_region
        _
      $region24: #{multilayer_gnn_forward.1} parent=11 // pred_fallthru
        _
      // Predicated region
      $region25: #{multilayer_gnn_forward.1} parent=11 // pred_check
        %p237 = pneg %p124
      $region26: #{multilayer_gnn_forward.1} parent=11 // pred_check_branch
        %239 = sbr.rel (%p237) target = $region28
      $region27: #{multilayer_gnn_forward.1} parent=11 // pred_region
        _
      $region28: #{multilayer_gnn_forward.1} parent=11 // pred_fallthru
        _
      // Predicated region
      $region29: #{multilayer_gnn_forward.1} parent=11 // pred_check
        %p240 = pneg %p145
      $region30: #{multilayer_gnn_forward.1} parent=11 // pred_check_branch
        %242 = sbr.rel (%p240) target = $region32
      $region31: #{multilayer_gnn_forward.1} parent=11 // pred_region
        _
      $region32: #{multilayer_gnn_forward.1} parent=11 // pred_fallthru
        _
      // Predicated region
      $region33: #{multilayer_gnn_forward.1} parent=11 // pred_check
        %p243 = pneg %p166
      $region34: #{multilayer_gnn_forward.1} parent=11 // pred_check_branch
        %245 = sbr.rel (%p243) target = $region36
      $region35: #{multilayer_gnn_forward.1} parent=11 // pred_region
        _
      $region36: #{multilayer_gnn_forward.1} parent=11 // pred_fallthru
        _
      // Predicated region
      $region37: #{multilayer_gnn_forward.1} parent=11 // pred_check
        %p246 = pneg %p187
      $region38: #{multilayer_gnn_forward.1} parent=11 // pred_check_branch
        %248 = sbr.rel (%p246) target = $region40
      $region39: #{multilayer_gnn_forward.1} parent=11 // pred_region
        _
      $region40: #{multilayer_gnn_forward.1} parent=11 // pred_fallthru
        _
    $region12: #{multilayer_gnn_forward.1} parent=5 // pred_fallthru
      _
    %p249 = scmp.lt.s32.totalorder %s14, 2
    // Predicated region
    $region41: #{multilayer_gnn_forward.1} parent=5 // pred_check
      %p250 = pneg %p249
    $region42: #{multilayer_gnn_forward.1} parent=5 // pred_check_branch
      %252 = sbr.rel (%p250) target = $region44
    $region43: #{multilayer_gnn_forward.1} parent=5 // pred_region
      // Predicated region
      $region45: #{multilayer_gnn_forward.1} parent=43 // pred_check
        %p253 = pneg %p55
      $region46: #{multilayer_gnn_forward.1} parent=43 // pred_check_branch
        %255 = sbr.rel (%p253) target = $region48
      $region47: #{multilayer_gnn_forward.1} parent=43 // pred_region
        %p256 = scmp.lt.s32.totalorder %s14, 1
        %s257 = scalar_select %p256, %s14, 1
        %s258 = smul.addr %s257, 16
        %s259 = smul.addr %s258, 4
        %s260 = scalar_lea.vmem %s1, %s259
      $region48: #{multilayer_gnn_forward.1} parent=43 // pred_fallthru
        _
    $region44: #{multilayer_gnn_forward.1} parent=5 // pred_fallthru
      _
    %p261 = scmp.le.s32.totalorder 1, %s14
    %p262 = scmp.lt.s32.totalorder %s14, 3
    %p263 = pnand %p261, %p262
    %p264 = pneg %p263
    // Predicated region
    $region49: #{multilayer_gnn_forward.1} parent=5 // pred_check
      _
    $region50: #{multilayer_gnn_forward.1} parent=5 // pred_check_branch
      %266 = sbr.rel (%p263) target = $region52
    $region51: #{multilayer_gnn_forward.1} parent=5 // pred_region
      %s267 = ssub.s32 %s14, 1
      %p268 = pneg %p35
      %p269 = pneg %p32
      %p270 = scmp.lt.s32.totalorder %s19, 1
      %s271 = scalar_select %p270, %s19, 1
      %s272 = smul.addr %s271, 16
      %s273 = smul.addr %s272, 4
      %s274 = scalar_lea.vmem %s1, %s273
      %p275 = pneg %p61
      %p276 = pneg %p58
      %p277 = pneg %p82
      %p278 = pneg %p79
      %p279 = pneg %p103
      %p280 = pneg %p100
      %p281 = pneg %p124
      %p282 = pneg %p121
      %p283 = pneg %p145
      %p284 = pneg %p142
      %p285 = pneg %p166
      %p286 = pneg %p163
      %p287 = pneg %p187
      %p288 = pneg %p184
      %p289 = pneg %p213
      %p290 = pneg %p210
      %p291 = scmp.lt.s32.totalorder %s19, 1
      %s292 = scalar_select %p291, %s19, 1
      %s293 = smul.addr %s292, 16
      %s294 = smul.addr %s293, 8
      %s295 = scalar_lea.vmem %s8, %s294
      %p296 = scmp.lt.s32.totalorder %s19, 1
      %s297 = scalar_select %p296, %s19, 1
      %s298 = smul.addr %s297, 16
      %s299 = smul.addr %s298, 4
      %s300 = scalar_lea.vmem %s1, %s299
      %p301 = scmp.lt.s32.totalorder %s19, 1
      %s302 = scalar_select %p301, %s19, 1
      %s303 = smul.addr %s302, 16
      %s304 = smul.addr %s303, 8
      %s305 = scalar_lea.vmem %s8, %s304
      %v306 = vld [vmem:[%s0] sm:$0xf]
      %v307 = vld [vmem:[%s0 + $0x4] sm:$0xf]
      %v308 = vld [vmem:[%s0 + $0x8] sm:$0xf]
      %v309 = vld [vmem:[%s0 + $0xc] sm:$0xf]
      %v310 = vld [vmem:[%s0 + $0x10] sm:$0xf]
      %v311 = vld [vmem:[%s0 + $0x14] sm:$0xf]
      %v312 = vld [vmem:[%s0 + $0x18] sm:$0xf]
      %v313 = vld [vmem:[%s0 + $0x1c] sm:$0xf]
      %v314 = vld [vmem:[%s0 + $0x20] sm:$0xf]
      %v315 = vld [vmem:[%s0 + $0x24] sm:$0xf]
      %v316 = vld [vmem:[%s0 + $0x28] sm:$0xf]
      %v317 = vld [vmem:[%s0 + $0x2c] sm:$0xf]
      %v318 = vld [vmem:[%s0 + $0x30] sm:$0xf]
      %v319 = vld [vmem:[%s0 + $0x34] sm:$0xf]
      %v320 = vld [vmem:[%s0 + $0x38] sm:$0xf]
      %v321 = vld [vmem:[%s0 + $0x3c] sm:$0xf]
      %v322 = vld [vmem:[%s300] sm:$0xf]
      %v323 = vld [vmem:[%s300 + $0x4] sm:$0xf]
      %v324 = vld [vmem:[%s300 + $0x8] sm:$0xf]
      %v325 = vld [vmem:[%s300 + $0xc] sm:$0xf]
      %v326 = vld [vmem:[%s300 + $0x10] sm:$0xf]
      %v327 = vld [vmem:[%s300 + $0x14] sm:$0xf]
      %v328 = vld [vmem:[%s300 + $0x18] sm:$0xf]
      %v329 = vld [vmem:[%s300 + $0x1c] sm:$0xf]
      %v330 = vld [vmem:[%s300 + $0x20] sm:$0xf]
      %v331 = vld [vmem:[%s300 + $0x24] sm:$0xf]
      %v332 = vld [vmem:[%s300 + $0x28] sm:$0xf]
      %v333 = vld [vmem:[%s300 + $0x2c] sm:$0xf]
      %v334 = vld [vmem:[%s300 + $0x30] sm:$0xf]
      %v335 = vld [vmem:[%s300 + $0x34] sm:$0xf]
      %v336 = vld [vmem:[%s300 + $0x38] sm:$0xf]
      %v337 = vld [vmem:[%s300 + $0x3c] sm:$0xf]
      %v338 = vld [vmem:[%s2] sm:$0xf]
      %v339 = vld [vmem:[%s2 + $0x4] sm:$0xf]
      %v340 = vld [vmem:[%s2 + $0x8] sm:$0xf]
      %v341 = vld [vmem:[%s2 + $0xc] sm:$0xf]
      %v342 = vld [vmem:[%s2 + $0x10] sm:$0xf]
      %v343 = vld [vmem:[%s2 + $0x14] sm:$0xf]
      %v344 = vld [vmem:[%s2 + $0x18] sm:$0xf]
      %v345 = vld [vmem:[%s2 + $0x1c] sm:$0xf]
      %v346 = vld [vmem:[%s2 + $0x20] sm:$0xf]
      %v347 = vld [vmem:[%s2 + $0x24] sm:$0xf]
      %v348 = vld [vmem:[%s2 + $0x28] sm:$0xf]
      %v349 = vld [vmem:[%s2 + $0x2c] sm:$0xf]
      %v350 = vld [vmem:[%s2 + $0x30] sm:$0xf]
      %v351 = vld [vmem:[%s2 + $0x34] sm:$0xf]
      %v352 = vld [vmem:[%s2 + $0x38] sm:$0xf]
      %v353 = vld [vmem:[%s2 + $0x3c] sm:$0xf]
      %v354 = vld [vmem:[%s3] sm:$0x1]
      %v371 = vunpack.c.l.b16 %v306
      %v372 = vunpack.c.l.b16 %v307
      %v373 = vunpack.c.l.b16 %v308
      %v374 = vunpack.c.l.b16 %v309
      %v375 = vunpack.c.l.b16 %v310
      %v376 = vunpack.c.l.b16 %v311
      %v377 = vunpack.c.l.b16 %v312
      %v378 = vunpack.c.l.b16 %v313
      %v379 = vunpack.c.l.b16 %v314
      %v380 = vunpack.c.l.b16 %v315
      %v381 = vunpack.c.l.b16 %v316
      %v382 = vunpack.c.l.b16 %v317
      %v383 = vunpack.c.l.b16 %v318
      %v384 = vunpack.c.l.b16 %v319
      %v385 = vunpack.c.l.b16 %v320
      %v386 = vunpack.c.l.b16 %v321
      %v387 = vpack.c.b16 %v372, %v371
      %v388 = vpack.c.b16 %v374, %v373
      %v389 = vpack.c.b16 %v376, %v375
      %v390 = vpack.c.b16 %v378, %v377
      %v391 = vpack.c.b16 %v380, %v379
      %v392 = vpack.c.b16 %v382, %v381
      %v393 = vpack.c.b16 %v384, %v383
      %v394 = vpack.c.b16 %v386, %v385
      %v419 = vunpack.c.l.b16 %v322
      %v420 = vunpack.c.l.b16 %v323
      %v421 = vunpack.c.l.b16 %v324
      %v422 = vunpack.c.l.b16 %v325
      %v423 = vunpack.c.l.b16 %v326
      %v424 = vunpack.c.l.b16 %v327
      %v425 = vunpack.c.l.b16 %v328
      %v426 = vunpack.c.l.b16 %v329
      %v427 = vunpack.c.l.b16 %v330
      %v428 = vunpack.c.l.b16 %v331
      %v429 = vunpack.c.l.b16 %v332
      %v430 = vunpack.c.l.b16 %v333
      %v431 = vunpack.c.l.b16 %v334
      %v432 = vunpack.c.l.b16 %v335
      %v433 = vunpack.c.l.b16 %v336
      %v434 = vunpack.c.l.b16 %v337
      %v435 = vpack.c.b16 %v420, %v419
      %v436 = vpack.c.b16 %v422, %v421
      %v437 = vpack.c.b16 %v424, %v423
      %v438 = vpack.c.b16 %v426, %v425
      %v439 = vpack.c.b16 %v428, %v427
      %v440 = vpack.c.b16 %v430, %v429
      %v441 = vpack.c.b16 %v432, %v431
      %v442 = vpack.c.b16 %v434, %v433
      %451 = vmatpush.bf16.msra.mxu0 %v442
      %452 = vmatpush.bf16.msra.mxu0 %v441
      %453 = vmatpush.bf16.msra.mxu0 %v440
      %454 = vmatpush.bf16.msra.mxu0 %v439
      %455 = vmatpush.bf16.msra.mxu0 %v438
      %456 = vmatpush.bf16.msra.mxu0 %v437
      %457 = vmatpush.bf16.msra.mxu0 %v436
      %458 = vmatpush.bf16.msra.mxu0 %v435
      %459 = vmatmul.bf16.gmra.mxu0 %v387
      %v460 = vpop.f32.mrf.mxu0
      %v461 = vadd.f32 0.0, %v460
      %v462 = vpop.f32.mrf.mxu0
      %v463 = vadd.f32 0.0, %v462
      %464 = vmatmul.bf16.gmra.mxu0 %v388
      %v465 = vpop.f32.mrf.mxu0
      %v466 = vadd.f32 0.0, %v465
      %v467 = vpop.f32.mrf.mxu0
      %v468 = vadd.f32 0.0, %v467
      %469 = vmatmul.bf16.gmra.mxu0 %v389
      %v470 = vpop.f32.mrf.mxu0
      %v471 = vadd.f32 0.0, %v470
      %v472 = vpop.f32.mrf.mxu0
      %v473 = vadd.f32 0.0, %v472
      %474 = vmatmul.bf16.gmra.mxu0 %v390
      %v475 = vpop.f32.mrf.mxu0
      %v476 = vadd.f32 0.0, %v475
      %v477 = vpop.f32.mrf.mxu0
      %v478 = vadd.f32 0.0, %v477
      %479 = vmatmul.bf16.gmra.mxu0 %v391
      %v480 = vpop.f32.mrf.mxu0
      %v481 = vadd.f32 0.0, %v480
      %v482 = vpop.f32.mrf.mxu0
      %v483 = vadd.f32 0.0, %v482
      %484 = vmatmul.bf16.gmra.mxu0 %v392
      %v485 = vpop.f32.mrf.mxu0
      %v486 = vadd.f32 0.0, %v485
      %v487 = vpop.f32.mrf.mxu0
      %v488 = vadd.f32 0.0, %v487
      %489 = vmatmul.bf16.gmra.mxu0 %v393
      %v490 = vpop.f32.mrf.mxu0
      %v491 = vadd.f32 0.0, %v490
      %v492 = vpop.f32.mrf.mxu0
      %v493 = vadd.f32 0.0, %v492
      %494 = vmatmul.bf16.gmra.mxu0 %v394
      %v495 = vpop.f32.mrf.mxu0
      %v496 = vadd.f32 0.0, %v495
      %v497 = vpop.f32.mrf.mxu0
      %v498 = vadd.f32 0.0, %v497
      %499 = vdwg.mxu0
      %v500 = vpack.c.bf16 %v463, %v461
      %v501 = vpack.c.bf16 %v468, %v466
      %v502 = vpack.c.bf16 %v473, %v471
      %v503 = vpack.c.bf16 %v478, %v476
      %v504 = vpack.c.bf16 %v483, %v481
      %v505 = vpack.c.bf16 %v488, %v486
      %v506 = vpack.c.bf16 %v493, %v491
      %v507 = vpack.c.bf16 %v498, %v496
      %v509 = vperm.slane %v354, 0
      %v527 = vunpack.c.l.b16 %v338
      %v528 = vunpack.c.l.b16 %v339
      %v529 = vunpack.c.l.b16 %v340
      %v530 = vunpack.c.l.b16 %v341
      %v531 = vunpack.c.l.b16 %v342
      %v532 = vunpack.c.l.b16 %v343
      %v533 = vunpack.c.l.b16 %v344
      %v534 = vunpack.c.l.b16 %v345
      %v535 = vunpack.c.l.b16 %v346
      %v536 = vunpack.c.l.b16 %v347
      %v537 = vunpack.c.l.b16 %v348
      %v538 = vunpack.c.l.b16 %v349
      %v539 = vunpack.c.l.b16 %v350
      %v540 = vunpack.c.l.b16 %v351
      %v541 = vunpack.c.l.b16 %v352
      %v542 = vunpack.c.l.b16 %v353
      %v543 = vpack.c.b16 %v528, %v527
      %v544 = vpack.c.b16 %v530, %v529
      %v545 = vpack.c.b16 %v532, %v531
      %v546 = vpack.c.b16 %v534, %v533
      %v547 = vpack.c.b16 %v536, %v535
      %v548 = vpack.c.b16 %v538, %v537
      %v549 = vpack.c.b16 %v540, %v539
      %v550 = vpack.c.b16 %v542, %v541
      %559 = vmatpush.bf16.msra.mxu0 %v550
      %560 = vmatpush.bf16.msra.mxu0 %v549
      %561 = vmatpush.bf16.msra.mxu0 %v548
      %562 = vmatpush.bf16.msra.mxu0 %v547
      %563 = vmatpush.bf16.msra.mxu0 %v546
      %564 = vmatpush.bf16.msra.mxu0 %v545
      %565 = vmatpush.bf16.msra.mxu0 %v544
      %566 = vmatpush.bf16.msra.mxu0 %v543
      %567 = vmatmul.bf16.gmra.mxu0 %v500
      %v568 = vpop.f32.mrf.mxu0
      %v569 = vadd.f32 %v509, %v568
      %v570 = vpop.f32.mrf.mxu0
      %v571 = vadd.f32 %v509, %v570
      %572 = vmatmul.bf16.gmra.mxu0 %v501
      %v573 = vpop.f32.mrf.mxu0
      %v574 = vadd.f32 %v509, %v573
      %v575 = vpop.f32.mrf.mxu0
      %v576 = vadd.f32 %v509, %v575
      %577 = vmatmul.bf16.gmra.mxu0 %v502
      %v578 = vpop.f32.mrf.mxu0
      %v579 = vadd.f32 %v509, %v578
      %v580 = vpop.f32.mrf.mxu0
      %v581 = vadd.f32 %v509, %v580
      %582 = vmatmul.bf16.gmra.mxu0 %v503
      %v583 = vpop.f32.mrf.mxu0
      %v584 = vadd.f32 %v509, %v583
      %v585 = vpop.f32.mrf.mxu0
      %v586 = vadd.f32 %v509, %v585
      %587 = vmatmul.bf16.gmra.mxu0 %v504
      %v588 = vpop.f32.mrf.mxu0
      %v589 = vadd.f32 %v509, %v588
      %v590 = vpop.f32.mrf.mxu0
      %v591 = vadd.f32 %v509, %v590
      %592 = vmatmul.bf16.gmra.mxu0 %v505
      %v593 = vpop.f32.mrf.mxu0
      %v594 = vadd.f32 %v509, %v593
      %v595 = vpop.f32.mrf.mxu0
      %v596 = vadd.f32 %v509, %v595
      %597 = vmatmul.bf16.gmra.mxu0 %v506
      %v598 = vpop.f32.mrf.mxu0
      %v599 = vadd.f32 %v509, %v598
      %v600 = vpop.f32.mrf.mxu0
      %v601 = vadd.f32 %v509, %v600
      %602 = vmatmul.bf16.gmra.mxu0 %v507
      %v603 = vpop.f32.mrf.mxu0
      %v604 = vadd.f32 %v509, %v603
      %v605 = vpop.f32.mrf.mxu0
      %v606 = vadd.f32 %v509, %v605
      %607 = vdwg.mxu0
      %v608 = vmax.f32 %v569, 0.0
      %v609 = vmax.f32 %v571, 0.0
      %v610 = vmax.f32 %v574, 0.0
      %v611 = vmax.f32 %v576, 0.0
      %v612 = vmax.f32 %v579, 0.0
      %v613 = vmax.f32 %v581, 0.0
      %v614 = vmax.f32 %v584, 0.0
      %v615 = vmax.f32 %v586, 0.0
      %v616 = vmax.f32 %v589, 0.0
      %v617 = vmax.f32 %v591, 0.0
      %v618 = vmax.f32 %v594, 0.0
      %v619 = vmax.f32 %v596, 0.0
      %v620 = vmax.f32 %v599, 0.0
      %v621 = vmax.f32 %v601, 0.0
      %v622 = vmax.f32 %v604, 0.0
      %v623 = vmax.f32 %v606, 0.0
      %v624 = vpack.c.bf16 %v609, %v608
      %v625 = vpack.c.bf16 %v611, %v610
      %v626 = vpack.c.bf16 %v613, %v612
      %v627 = vpack.c.bf16 %v615, %v614
      %v628 = vpack.c.bf16 %v617, %v616
      %v629 = vpack.c.bf16 %v619, %v618
      %v630 = vpack.c.bf16 %v621, %v620
      %v631 = vpack.c.bf16 %v623, %v622
      %v632 = vld [vmem:[%s4] sm:$0xf]
      %v633 = vld [vmem:[%s4 + $0x4] sm:$0xf]
      %v634 = vld [vmem:[%s4 + $0x8] sm:$0xf]
      %v635 = vld [vmem:[%s4 + $0xc] sm:$0xf]
      %v636 = vld [vmem:[%s4 + $0x10] sm:$0xf]
      %v637 = vld [vmem:[%s4 + $0x14] sm:$0xf]
      %v638 = vld [vmem:[%s4 + $0x18] sm:$0xf]
      %v639 = vld [vmem:[%s4 + $0x1c] sm:$0xf]
      %v640 = vld [vmem:[%s4 + $0x20] sm:$0xf]
      %v641 = vld [vmem:[%s4 + $0x24] sm:$0xf]
      %v642 = vld [vmem:[%s4 + $0x28] sm:$0xf]
      %v643 = vld [vmem:[%s4 + $0x2c] sm:$0xf]
      %v644 = vld [vmem:[%s4 + $0x30] sm:$0xf]
      %v645 = vld [vmem:[%s4 + $0x34] sm:$0xf]
      %v646 = vld [vmem:[%s4 + $0x38] sm:$0xf]
      %v647 = vld [vmem:[%s4 + $0x3c] sm:$0xf]
      %v648 = vld [vmem:[%s5] sm:$0x1]
      %649 = vmatpush.bf16.msra.mxu0 %v631
      %650 = vmatpush.bf16.msra.mxu0 %v630
      %651 = vmatpush.bf16.msra.mxu0 %v629
      %652 = vmatpush.bf16.msra.mxu0 %v628
      %653 = vmatpush.bf16.msra.mxu0 %v627
      %654 = vmatpush.bf16.msra.mxu0 %v626
      %655 = vmatpush.bf16.msra.mxu0 %v625
      %656 = vmatpush.bf16.msra.mxu0 %v624
      %657 = vmatmul.bf16.gmra.mxu0 %v387
      %v658 = vpop.f32.mrf.mxu0
      %v659 = vadd.f32 0.0, %v658
      %v660 = vpop.f32.mrf.mxu0
      %v661 = vadd.f32 0.0, %v660
      %662 = vmatmul.bf16.gmra.mxu0 %v388
      %v663 = vpop.f32.mrf.mxu0
      %v664 = vadd.f32 0.0, %v663
      %v665 = vpop.f32.mrf.mxu0
      %v666 = vadd.f32 0.0, %v665
      %667 = vmatmul.bf16.gmra.mxu0 %v389
      %v668 = vpop.f32.mrf.mxu0
      %v669 = vadd.f32 0.0, %v668
      %v670 = vpop.f32.mrf.mxu0
      %v671 = vadd.f32 0.0, %v670
      %672 = vmatmul.bf16.gmra.mxu0 %v390
      %v673 = vpop.f32.mrf.mxu0
      %v674 = vadd.f32 0.0, %v673
      %v675 = vpop.f32.mrf.mxu0
      %v676 = vadd.f32 0.0, %v675
      %677 = vmatmul.bf16.gmra.mxu0 %v391
      %v678 = vpop.f32.mrf.mxu0
      %v679 = vadd.f32 0.0, %v678
      %v680 = vpop.f32.mrf.mxu0
      %v681 = vadd.f32 0.0, %v680
      %682 = vmatmul.bf16.gmra.mxu0 %v392
      %v683 = vpop.f32.mrf.mxu0
      %v684 = vadd.f32 0.0, %v683
      %v685 = vpop.f32.mrf.mxu0
      %v686 = vadd.f32 0.0, %v685
      %687 = vmatmul.bf16.gmra.mxu0 %v393
      %v688 = vpop.f32.mrf.mxu0
      %v689 = vadd.f32 0.0, %v688
      %v690 = vpop.f32.mrf.mxu0
      %v691 = vadd.f32 0.0, %v690
      %692 = vmatmul.bf16.gmra.mxu0 %v394
      %v693 = vpop.f32.mrf.mxu0
      %v694 = vadd.f32 0.0, %v693
      %v695 = vpop.f32.mrf.mxu0
      %v696 = vadd.f32 0.0, %v695
      %697 = vdwg.mxu0
      %v698 = vpack.c.bf16 %v661, %v659
      %v699 = vpack.c.bf16 %v666, %v664
      %v700 = vpack.c.bf16 %v671, %v669
      %v701 = vpack.c.bf16 %v676, %v674
      %v702 = vpack.c.bf16 %v681, %v679
      %v703 = vpack.c.bf16 %v686, %v684
      %v704 = vpack.c.bf16 %v691, %v689
      %v705 = vpack.c.bf16 %v696, %v694
      %v707 = vperm.slane %v648, 0
      %v725 = vunpack.c.l.b16 %v632
      %v726 = vunpack.c.l.b16 %v633
      %v727 = vunpack.c.l.b16 %v634
      %v728 = vunpack.c.l.b16 %v635
      %v729 = vunpack.c.l.b16 %v636
      %v730 = vunpack.c.l.b16 %v637
      %v731 = vunpack.c.l.b16 %v638
      %v732 = vunpack.c.l.b16 %v639
      %v733 = vunpack.c.l.b16 %v640
      %v734 = vunpack.c.l.b16 %v641
      %v735 = vunpack.c.l.b16 %v642
      %v736 = vunpack.c.l.b16 %v643
      %v737 = vunpack.c.l.b16 %v644
      %v738 = vunpack.c.l.b16 %v645
      %v739 = vunpack.c.l.b16 %v646
      %v740 = vunpack.c.l.b16 %v647
      %v741 = vpack.c.b16 %v726, %v725
      %v742 = vpack.c.b16 %v728, %v727
      %v743 = vpack.c.b16 %v730, %v729
      %v744 = vpack.c.b16 %v732, %v731
      %v745 = vpack.c.b16 %v734, %v733
      %v746 = vpack.c.b16 %v736, %v735
      %v747 = vpack.c.b16 %v738, %v737
      %v748 = vpack.c.b16 %v740, %v739
      %757 = vmatpush.bf16.msra.mxu0 %v748
      %758 = vmatpush.bf16.msra.mxu0 %v747
      %759 = vmatpush.bf16.msra.mxu0 %v746
      %760 = vmatpush.bf16.msra.mxu0 %v745
      %761 = vmatpush.bf16.msra.mxu0 %v744
      %762 = vmatpush.bf16.msra.mxu0 %v743
      %763 = vmatpush.bf16.msra.mxu0 %v742
      %764 = vmatpush.bf16.msra.mxu0 %v741
      %765 = vmatmul.bf16.gmra.mxu0 %v698
      %v766 = vpop.f32.mrf.mxu0
      %v767 = vadd.f32 %v707, %v766
      %v768 = vpop.f32.mrf.mxu0
      %v769 = vadd.f32 %v707, %v768
      %770 = vmatmul.bf16.gmra.mxu0 %v699
      %v771 = vpop.f32.mrf.mxu0
      %v772 = vadd.f32 %v707, %v771
      %v773 = vpop.f32.mrf.mxu0
      %v774 = vadd.f32 %v707, %v773
      %775 = vmatmul.bf16.gmra.mxu0 %v700
      %v776 = vpop.f32.mrf.mxu0
      %v777 = vadd.f32 %v707, %v776
      %v778 = vpop.f32.mrf.mxu0
      %v779 = vadd.f32 %v707, %v778
      %780 = vmatmul.bf16.gmra.mxu0 %v701
      %v781 = vpop.f32.mrf.mxu0
      %v782 = vadd.f32 %v707, %v781
      %v783 = vpop.f32.mrf.mxu0
      %v784 = vadd.f32 %v707, %v783
      %785 = vmatmul.bf16.gmra.mxu0 %v702
      %v786 = vpop.f32.mrf.mxu0
      %v787 = vadd.f32 %v707, %v786
      %v788 = vpop.f32.mrf.mxu0
      %v789 = vadd.f32 %v707, %v788
      %790 = vmatmul.bf16.gmra.mxu0 %v703
      %v791 = vpop.f32.mrf.mxu0
      %v792 = vadd.f32 %v707, %v791
      %v793 = vpop.f32.mrf.mxu0
      %v794 = vadd.f32 %v707, %v793
      %795 = vmatmul.bf16.gmra.mxu0 %v704
      %v796 = vpop.f32.mrf.mxu0
      %v797 = vadd.f32 %v707, %v796
      %v798 = vpop.f32.mrf.mxu0
      %v799 = vadd.f32 %v707, %v798
      %800 = vmatmul.bf16.gmra.mxu0 %v705
      %v801 = vpop.f32.mrf.mxu0
      %v802 = vadd.f32 %v707, %v801
      %v803 = vpop.f32.mrf.mxu0
      %v804 = vadd.f32 %v707, %v803
      %805 = vdwg.mxu0
      %v806 = vmax.f32 %v767, 0.0
      %v807 = vmax.f32 %v769, 0.0
      %v808 = vmax.f32 %v772, 0.0
      %v809 = vmax.f32 %v774, 0.0
      %v810 = vmax.f32 %v777, 0.0
      %v811 = vmax.f32 %v779, 0.0
      %v812 = vmax.f32 %v782, 0.0
      %v813 = vmax.f32 %v784, 0.0
      %v814 = vmax.f32 %v787, 0.0
      %v815 = vmax.f32 %v789, 0.0
      %v816 = vmax.f32 %v792, 0.0
      %v817 = vmax.f32 %v794, 0.0
      %v818 = vmax.f32 %v797, 0.0
      %v819 = vmax.f32 %v799, 0.0
      %v820 = vmax.f32 %v802, 0.0
      %v821 = vmax.f32 %v804, 0.0
      %v822 = vpack.c.bf16 %v807, %v806
      %v823 = vpack.c.bf16 %v809, %v808
      %v824 = vpack.c.bf16 %v811, %v810
      %v825 = vpack.c.bf16 %v813, %v812
      %v826 = vpack.c.bf16 %v815, %v814
      %v827 = vpack.c.bf16 %v817, %v816
      %v828 = vpack.c.bf16 %v819, %v818
      %v829 = vpack.c.bf16 %v821, %v820
      %v830 = vld [vmem:[%s6] sm:$0xf]
      %v831 = vld [vmem:[%s6 + $0x4] sm:$0xf]
      %v832 = vld [vmem:[%s6 + $0x8] sm:$0xf]
      %v833 = vld [vmem:[%s6 + $0xc] sm:$0xf]
      %v834 = vld [vmem:[%s6 + $0x10] sm:$0xf]
      %v835 = vld [vmem:[%s6 + $0x14] sm:$0xf]
      %v836 = vld [vmem:[%s6 + $0x18] sm:$0xf]
      %v837 = vld [vmem:[%s6 + $0x1c] sm:$0xf]
      %v838 = vld [vmem:[%s6 + $0x20] sm:$0xf]
      %v839 = vld [vmem:[%s6 + $0x24] sm:$0xf]
      %v840 = vld [vmem:[%s6 + $0x28] sm:$0xf]
      %v841 = vld [vmem:[%s6 + $0x2c] sm:$0xf]
      %v842 = vld [vmem:[%s6 + $0x30] sm:$0xf]
      %v843 = vld [vmem:[%s6 + $0x34] sm:$0xf]
      %v844 = vld [vmem:[%s6 + $0x38] sm:$0xf]
      %v845 = vld [vmem:[%s6 + $0x3c] sm:$0xf]
      %v846 = vld [vmem:[%s7] sm:$0x1]
      %847 = vmatpush.bf16.msra.mxu0 %v829
      %848 = vmatpush.bf16.msra.mxu0 %v828
      %849 = vmatpush.bf16.msra.mxu0 %v827
      %850 = vmatpush.bf16.msra.mxu0 %v826
      %851 = vmatpush.bf16.msra.mxu0 %v825
      %852 = vmatpush.bf16.msra.mxu0 %v824
      %853 = vmatpush.bf16.msra.mxu0 %v823
      %854 = vmatpush.bf16.msra.mxu0 %v822
      %855 = vmatmul.bf16.gmra.mxu0 %v387
      %v856 = vpop.f32.mrf.mxu0
      %v857 = vadd.f32 0.0, %v856
      %v858 = vpop.f32.mrf.mxu0
      %v859 = vadd.f32 0.0, %v858
      %860 = vmatmul.bf16.gmra.mxu0 %v388
      %v861 = vpop.f32.mrf.mxu0
      %v862 = vadd.f32 0.0, %v861
      %v863 = vpop.f32.mrf.mxu0
      %v864 = vadd.f32 0.0, %v863
      %865 = vmatmul.bf16.gmra.mxu0 %v389
      %v866 = vpop.f32.mrf.mxu0
      %v867 = vadd.f32 0.0, %v866
      %v868 = vpop.f32.mrf.mxu0
      %v869 = vadd.f32 0.0, %v868
      %870 = vmatmul.bf16.gmra.mxu0 %v390
      %v871 = vpop.f32.mrf.mxu0
      %v872 = vadd.f32 0.0, %v871
      %v873 = vpop.f32.mrf.mxu0
      %v874 = vadd.f32 0.0, %v873
      %875 = vmatmul.bf16.gmra.mxu0 %v391
      %v876 = vpop.f32.mrf.mxu0
      %v877 = vadd.f32 0.0, %v876
      %v878 = vpop.f32.mrf.mxu0
      %v879 = vadd.f32 0.0, %v878
      %880 = vmatmul.bf16.gmra.mxu0 %v392
      %v881 = vpop.f32.mrf.mxu0
      %v882 = vadd.f32 0.0, %v881
      %v883 = vpop.f32.mrf.mxu0
      %v884 = vadd.f32 0.0, %v883
      %885 = vmatmul.bf16.gmra.mxu0 %v393
      %v886 = vpop.f32.mrf.mxu0
      %v887 = vadd.f32 0.0, %v886
      %v888 = vpop.f32.mrf.mxu0
      %v889 = vadd.f32 0.0, %v888
      %890 = vmatmul.bf16.gmra.mxu0 %v394
      %v891 = vpop.f32.mrf.mxu0
      %v892 = vadd.f32 0.0, %v891
      %v893 = vpop.f32.mrf.mxu0
      %v894 = vadd.f32 0.0, %v893
      %895 = vdwg.mxu0
      %v896 = vpack.c.bf16 %v859, %v857
      %v897 = vpack.c.bf16 %v864, %v862
      %v898 = vpack.c.bf16 %v869, %v867
      %v899 = vpack.c.bf16 %v874, %v872
      %v900 = vpack.c.bf16 %v879, %v877
      %v901 = vpack.c.bf16 %v884, %v882
      %v902 = vpack.c.bf16 %v889, %v887
      %v903 = vpack.c.bf16 %v894, %v892
      %v905 = vperm.slane %v846, 0
      %v923 = vunpack.c.l.b16 %v830
      %v924 = vunpack.c.l.b16 %v831
      %v925 = vunpack.c.l.b16 %v832
      %v926 = vunpack.c.l.b16 %v833
      %v927 = vunpack.c.l.b16 %v834
      %v928 = vunpack.c.l.b16 %v835
      %v929 = vunpack.c.l.b16 %v836
      %v930 = vunpack.c.l.b16 %v837
      %v931 = vunpack.c.l.b16 %v838
      %v932 = vunpack.c.l.b16 %v839
      %v933 = vunpack.c.l.b16 %v840
      %v934 = vunpack.c.l.b16 %v841
      %v935 = vunpack.c.l.b16 %v842
      %v936 = vunpack.c.l.b16 %v843
      %v937 = vunpack.c.l.b16 %v844
      %v938 = vunpack.c.l.b16 %v845
      %v939 = vpack.c.b16 %v924, %v923
      %v940 = vpack.c.b16 %v926, %v925
      %v941 = vpack.c.b16 %v928, %v927
      %v942 = vpack.c.b16 %v930, %v929
      %v943 = vpack.c.b16 %v932, %v931
      %v944 = vpack.c.b16 %v934, %v933
      %v945 = vpack.c.b16 %v936, %v935
      %v946 = vpack.c.b16 %v938, %v937
      %955 = vmatpush.bf16.msra.mxu0 %v946
      %956 = vmatpush.bf16.msra.mxu0 %v945
      %957 = vmatpush.bf16.msra.mxu0 %v944
      %958 = vmatpush.bf16.msra.mxu0 %v943
      %959 = vmatpush.bf16.msra.mxu0 %v942
      %960 = vmatpush.bf16.msra.mxu0 %v941
      %961 = vmatpush.bf16.msra.mxu0 %v940
      %962 = vmatpush.bf16.msra.mxu0 %v939
      %963 = vmatmul.bf16.gmra.mxu0 %v896
      %v964 = vpop.f32.mrf.mxu0
      %v965 = vadd.f32 %v905, %v964
      %v966 = vpop.f32.mrf.mxu0
      %v967 = vadd.f32 %v905, %v966
      %968 = vmatmul.bf16.gmra.mxu0 %v897
      %v969 = vpop.f32.mrf.mxu0
      %v970 = vadd.f32 %v905, %v969
      %v971 = vpop.f32.mrf.mxu0
      %v972 = vadd.f32 %v905, %v971
      %973 = vmatmul.bf16.gmra.mxu0 %v898
      %v974 = vpop.f32.mrf.mxu0
      %v975 = vadd.f32 %v905, %v974
      %v976 = vpop.f32.mrf.mxu0
      %v977 = vadd.f32 %v905, %v976
      %978 = vmatmul.bf16.gmra.mxu0 %v899
      %v979 = vpop.f32.mrf.mxu0
      %v980 = vadd.f32 %v905, %v979
      %v981 = vpop.f32.mrf.mxu0
      %v982 = vadd.f32 %v905, %v981
      %983 = vmatmul.bf16.gmra.mxu0 %v900
      %v984 = vpop.f32.mrf.mxu0
      %v985 = vadd.f32 %v905, %v984
      %v986 = vpop.f32.mrf.mxu0
      %v987 = vadd.f32 %v905, %v986
      %988 = vmatmul.bf16.gmra.mxu0 %v901
      %v989 = vpop.f32.mrf.mxu0
      %v990 = vadd.f32 %v905, %v989
      %v991 = vpop.f32.mrf.mxu0
      %v992 = vadd.f32 %v905, %v991
      %993 = vmatmul.bf16.gmra.mxu0 %v902
      %v994 = vpop.f32.mrf.mxu0
      %v995 = vadd.f32 %v905, %v994
      %v996 = vpop.f32.mrf.mxu0
      %v997 = vadd.f32 %v905, %v996
      %998 = vmatmul.bf16.gmra.mxu0 %v903
      %v999 = vpop.f32.mrf.mxu0
      %v1000 = vadd.f32 %v905, %v999
      %v1001 = vpop.f32.mrf.mxu0
      %v1002 = vadd.f32 %v905, %v1001
      %1003 = vdwg.mxu0
      %v1004 = vmax.f32 %v965, 0.0
      %v1005 = vmax.f32 %v967, 0.0
      %v1006 = vmax.f32 %v970, 0.0
      %v1007 = vmax.f32 %v972, 0.0
      %v1008 = vmax.f32 %v975, 0.0
      %v1009 = vmax.f32 %v977, 0.0
      %v1010 = vmax.f32 %v980, 0.0
      %v1011 = vmax.f32 %v982, 0.0
      %v1012 = vmax.f32 %v985, 0.0
      %v1013 = vmax.f32 %v987, 0.0
      %v1014 = vmax.f32 %v990, 0.0
      %v1015 = vmax.f32 %v992, 0.0
      %v1016 = vmax.f32 %v995, 0.0
      %v1017 = vmax.f32 %v997, 0.0
      %v1018 = vmax.f32 %v1000, 0.0
      %v1019 = vmax.f32 %v1002, 0.0
      %1020 = vst [vmem:[%s305] sm:$0xff] %v1004
      %1021 = vst [vmem:[%s305 + $0x8] sm:$0xff] %v1005
      %1022 = vst [vmem:[%s305 + $0x10] sm:$0xff] %v1006
      %1023 = vst [vmem:[%s305 + $0x18] sm:$0xff] %v1007
      %1024 = vst [vmem:[%s305 + $0x20] sm:$0xff] %v1008
      %1025 = vst [vmem:[%s305 + $0x28] sm:$0xff] %v1009
      %1026 = vst [vmem:[%s305 + $0x30] sm:$0xff] %v1010
      %1027 = vst [vmem:[%s305 + $0x38] sm:$0xff] %v1011
      %1028 = vst [vmem:[%s305 + $0x40] sm:$0xff] %v1012
      %1029 = vst [vmem:[%s305 + $0x48] sm:$0xff] %v1013
      %1030 = vst [vmem:[%s305 + $0x50] sm:$0xff] %v1014
      %1031 = vst [vmem:[%s305 + $0x58] sm:$0xff] %v1015
      %1032 = vst [vmem:[%s305 + $0x60] sm:$0xff] %v1016
      %1033 = vst [vmem:[%s305 + $0x68] sm:$0xff] %v1017
      %1034 = vst [vmem:[%s305 + $0x70] sm:$0xff] %v1018
      %1035 = vst [vmem:[%s305 + $0x78] sm:$0xff] %v1019
      %p1036 = scmp.lt.s32.totalorder %s19, 1
      %s1037 = scalar_select %p1036, %s19, 1
      %s1038 = smul.addr %s1037, 16
      %s1039 = smul.addr %s1038, 8
      %s1040 = scalar_lea.vmem %s8, %s1039
      // Predicated region
      $region53: #{multilayer_gnn_forward.1} parent=51 // pred_check
        %p1041 = pneg %p210
      $region54: #{multilayer_gnn_forward.1} parent=51 // pred_check_branch
        %1043 = sbr.rel (%p1041) target = $region56
      $region55: #{multilayer_gnn_forward.1} parent=51 // pred_region
        _
      $region56: #{multilayer_gnn_forward.1} parent=51 // pred_fallthru
        _
    $region52: #{multilayer_gnn_forward.1} parent=5 // pred_fallthru
      _
    %p1044 = scmp.le.s32.totalorder 2, %s14
    // Predicated region
    $region57: #{multilayer_gnn_forward.1} parent=5 // pred_check
      %p1045 = pneg %p1044
    $region58: #{multilayer_gnn_forward.1} parent=5 // pred_check_branch
      %1047 = sbr.rel (%p1045) target = $region60
    $region59: #{multilayer_gnn_forward.1} parent=5 // pred_region
      %s1048 = ssub.s32 %s14, 2
      // Predicated region
      $region61: #{multilayer_gnn_forward.1} parent=59 // pred_check
        %p1049 = pneg %p216
      $region62: #{multilayer_gnn_forward.1} parent=59 // pred_check_branch
        %1051 = sbr.rel (%p1049) target = $region64
      $region63: #{multilayer_gnn_forward.1} parent=59 // pred_region
        %p1052 = scmp.lt.s32.totalorder %s20, 1
        %s1053 = scalar_select %p1052, %s20, 1
        %s1054 = smul.addr %s1053, 16
        %s1055 = smul.addr %s1054, 8
        %s1056 = scalar_lea.vmem %s8, %s1055
      $region64: #{multilayer_gnn_forward.1} parent=59 // pred_fallthru
        _
    $region60: #{multilayer_gnn_forward.1} parent=5 // pred_fallthru
      _
  $region6: #{multilayer_gnn_forward.1} parent=0 // loop_footer
    %s18 = sadd.s32 1, %s14
  $region7: #{multilayer_gnn_forward.1} parent=0 // loop_footer_branch
    %13 = sbr.rel target = $region3
  $region8: #{multilayer_gnn_forward.1} parent=0 // loop_exit
    _

</llo_original>
